<compile_context>
chip_gen: v5e
topology: v5e:2x2
jax: 0.10.0
libtpu: 0.0.40
codegen_flags: <defaults>
</compile_context>

<pallas_src>
import jax
import jax.numpy as jnp
from jax.experimental import pallas as pl
from jax.experimental.pallas import tpu as pltpu


def heartnet_kernel(x_ref, w1_ref, b1_ref, w2_ref, b2_ref, w3_ref, b3_ref, o_ref):
    # x_ref: (TB, D) natural layout.  Transpose on the XLU so every downstream
    # activation is batch-on-lanes (full 128-lane vregs, lane-dense final store).
    xT = x_ref[...].T                                                      # (D, TB) f32
    # Linear(D,16) + ReLU   ((16,D) @ (D,TB) -> (16,TB))
    h1 = jnp.dot(w1_ref[...], xT, preferred_element_type=jnp.float32) + b1_ref[...]
    h1 = jnp.maximum(h1, 0.0)
    # Dropout(0.2): identity at inference time.
    # Linear(16,8) + ReLU   ((8,16) @ (16,TB) -> (8,TB))
    h2 = jnp.dot(w2_ref[...], h1, preferred_element_type=jnp.float32) + b2_ref[...]
    h2 = jnp.maximum(h2, 0.0)
    # Linear(8,1) + Sigmoid ((1,8) @ (8,TB) -> (1,TB), lane-dense unmasked store)
    z = jnp.dot(w3_ref[...], h2, preferred_element_type=jnp.float32) + b3_ref[...]
    o_ref[...] = jax.nn.sigmoid(z)                                         # (1, TB)


def _pick_tile(batch, tile_b):
    """Batch-tile (lane) width.

    Small batches: one full-extent block.  Otherwise a multiple of 128, capped at
    tile_b and at half the (lane-rounded) batch so the grid has >= 2 steps and the
    v7x megacore split actually engages.
    """
    if batch <= 256:
        return batch
    b_lanes = pl.cdiv(batch, 128) * 128
    half = max(128, (b_lanes // 2 // 128) * 128)
    return min(tile_b, half)


def heartnet_forward(x, params, tile_b=8192):
    """x: (B, D) float32.  params: W1(16,D), b1(16,1), W2(8,16), b2(8,1), W3(1,8), b3(1,1).

    Returns (B, 1) float32, identical math to the PyTorch module in eval mode.
    """
    B, D = x.shape
    assert tile_b % 128 == 0, "tile_b must be a multiple of 128 (lane constraint)"

    TB = _pick_tile(B, tile_b)
    n_steps = pl.cdiv(B, TB)           # edge block masked by Pallas; no jnp.pad pass

    # Explicit scoped-VMEM budget (v5e default is only 16 MiB): double-buffered
    # lane-padded x blocks + output blocks + in-kernel transposed intermediates.
    lane = 128
    d_pad = pl.cdiv(D, lane) * lane                      # (TB, D) block pads lanes to 128
    x_block_vmem = TB * d_pad * 4
    out_block_vmem = 8 * (pl.cdiv(TB, lane) * lane) * 4  # (1, TB) block pads sublanes to 8
    scratch_vmem = x_block_vmem                          # xT + small transposed activations
    vmem_needed = 2 * x_block_vmem + 2 * out_block_vmem + scratch_vmem + (2 << 20)
    vmem_limit = int(min(max(vmem_needed, 32 << 20), 64 << 20))

    const = lambda shape: pl.BlockSpec(shape, lambda i: (0, 0))  # VMEM-resident weights/biases

    out_row = pl.pallas_call(
        heartnet_kernel,
        out_shape=jax.ShapeDtypeStruct((1, B), jnp.float32),
        grid=(n_steps,),
        in_specs=[
            pl.BlockSpec((TB, D), lambda i: (i, 0)),     # x: batch-tiled, double-buffered
            const((16, D)), const((16, 1)),
            const((8, 16)), const((8, 1)),
            const((1, 8)),  const((1, 1)),
        ],
        out_specs=pl.BlockSpec((1, TB), lambda i: (0, i)),   # lane-dense output row
        compiler_params=pltpu.CompilerParams(
            dimension_semantics=("parallel",),               # megacore shard on v7x
            vmem_limit_bytes=vmem_limit),
    )(x, params["W1"], params["b1"], params["W2"], params["b2"],
      params["W3"], params["b3"])

    return out_row.reshape(B, 1)


def init_params(key, input_size):
    """Deterministic init mimicking nn.Linear's U(-1/sqrt(fan_in), 1/sqrt(fan_in)).

    W stored as (out_features, in_features) (PyTorch layout == transposed-kernel layout),
    b stored as (out_features, 1) so it broadcasts over batch lanes.
    """
    ks = jax.random.split(key, 6)

    def linear(kw, kb, fan_in, fan_out):
        bound = 1.0 / jnp.sqrt(fan_in)
        W = jax.random.uniform(kw, (fan_out, fan_in), jnp.float32, -bound, bound)
        b = jax.random.uniform(kb, (fan_out, 1), jnp.float32, -bound, bound)
        return W, b

    W1, b1 = linear(ks[0], ks[1], input_size, 16)
    W2, b2 = linear(ks[2], ks[3], 16, 8)
    W3, b3 = linear(ks[4], ks[5], 8, 1)
    return {"W1": W1, "b1": b1, "W2": W2, "b2": b2, "W3": W3, "b3": b3}


def heartnet_reference(x, p):
    h1 = jnp.maximum(x @ p["W1"].T + p["b1"].T, 0.0)
    h2 = jnp.maximum(h1 @ p["W2"].T + p["b2"].T, 0.0)
    return jax.nn.sigmoid(h2 @ p["W3"].T + p["b3"].T)


if __name__ == "__main__":
    key = jax.random.PRNGKey(0)
    k_x, k_p, k_x2 = jax.random.split(key, 3)

    # Small demo shapes (single-block path).
    batch, input_size = 8, 32
    params = init_params(k_p, input_size)
    x = jax.random.normal(k_x, (batch, input_size), jnp.float32)

    out = jax.block_until_ready(heartnet_forward(x, params))
    ref = heartnet_reference(x, params)
    assert out.shape == (batch, 1)
    assert jnp.allclose(out, ref, atol=1e-5, rtol=1e-5)

    # Multi-step path: >= 2 grid steps (megacore) + masked edge block (1000 % 512 != 0).
    batch2 = 1000
    x2 = jax.random.normal(k_x2, (batch2, input_size), jnp.float32)
    out2 = jax.block_until_ready(heartnet_forward(x2, params))
    ref2 = heartnet_reference(x2, params)
    assert out2.shape == (batch2, 1)
    assert jnp.allclose(out2, ref2, atol=1e-5, rtol=1e-5)

    print("KERNEL_OK")
</pallas_src>

<mosaic_0001>
module attributes {stable_mosaic.version = 11 : i64} {
  func.func @heartnet_kernel(%arg0: i32, %arg1: memref<8x32xf32, #tpu.memory_space<vmem>>, %arg2: memref<16x32xf32, #tpu.memory_space<vmem>>, %arg3: memref<16x1xf32, #tpu.memory_space<vmem>>, %arg4: memref<8x16xf32, #tpu.memory_space<vmem>>, %arg5: memref<8x1xf32, #tpu.memory_space<vmem>>, %arg6: memref<1x8xf32, #tpu.memory_space<vmem>>, %arg7: memref<1x1xf32, #tpu.memory_space<vmem>>, %arg8: memref<1x8xf32, #tpu.memory_space<vmem>>) attributes {dimension_semantics = [#tpu.dimension_semantics<parallel>], iteration_bounds = array<i64: 1>, scalar_prefetch = 0 : i64, scratch_operands = 0 : i64, tpu.core_type = #tpu.core_type<tc>, window_params = [{transform_indices = @transform_0, window_bounds = array<i64: 8, 32>}, {pipeline_mode = #tpu.pipeline_mode<synchronous>, transform_indices = @transform_1, window_bounds = array<i64: 16, 32>}, {pipeline_mode = #tpu.pipeline_mode<synchronous>, transform_indices = @transform_2, window_bounds = array<i64: 16, 1>}, {pipeline_mode = #tpu.pipeline_mode<synchronous>, transform_indices = @transform_3, window_bounds = array<i64: 8, 16>}, {pipeline_mode = #tpu.pipeline_mode<synchronous>, transform_indices = @transform_4, window_bounds = array<i64: 8, 1>}, {pipeline_mode = #tpu.pipeline_mode<synchronous>, transform_indices = @transform_5, window_bounds = array<i64: 1, 8>}, {pipeline_mode = #tpu.pipeline_mode<synchronous>, transform_indices = @transform_6, window_bounds = array<i64: 1, 1>}, {transform_indices = @transform_7, window_bounds = array<i64: 1, 8>}]} {
    %c0 = arith.constant 0 : index
    %c0_0 = arith.constant 0 : index
    %0 = vector.load %arg1[%c0, %c0_0] : memref<8x32xf32, #tpu.memory_space<vmem>>, vector<8x32xf32>
    %1 = tpu.transpose %0, [1, 0] : vector<8x32xf32> -> vector<32x8xf32>
    %c0_1 = arith.constant 0 : index
    %c0_2 = arith.constant 0 : index
    %2 = vector.load %arg2[%c0_1, %c0_2] : memref<16x32xf32, #tpu.memory_space<vmem>>, vector<16x32xf32>
    %cst = arith.constant dense<0.000000e+00> : vector<16x8xf32>
    %3 = tpu.matmul %2, %1, %cst {dimension_numbers = #tpu.dot_dimension_numbers<[1], [0], [0], [1], [0, 0, 1, 1], [], []>} : vector<16x32xf32>, vector<32x8xf32>, vector<16x8xf32> -> vector<16x8xf32>
    %c0_3 = arith.constant 0 : index
    %c0_4 = arith.constant 0 : index
    %4 = vector.load %arg3[%c0_3, %c0_4] : memref<16x1xf32, #tpu.memory_space<vmem>>, vector<16x1xf32>
    %5 = vector.broadcast %4 : vector<16x1xf32> to vector<16x8xf32>
    %6 = arith.addf %3, %5 : vector<16x8xf32>
    %cst_5 = arith.constant 0.000000e+00 : f32
    %7 = vector.broadcast %cst_5 : f32 to vector<16x8xf32>
    %8 = arith.maximumf %6, %7 : vector<16x8xf32>
    %c0_6 = arith.constant 0 : index
    %c0_7 = arith.constant 0 : index
    %9 = vector.load %arg4[%c0_6, %c0_7] : memref<8x16xf32, #tpu.memory_space<vmem>>, vector<8x16xf32>
    %cst_8 = arith.constant dense<0.000000e+00> : vector<8x8xf32>
    %10 = tpu.matmul %9, %8, %cst_8 {dimension_numbers = #tpu.dot_dimension_numbers<[1], [0], [0], [1], [0, 0, 1, 1], [], []>} : vector<8x16xf32>, vector<16x8xf32>, vector<8x8xf32> -> vector<8x8xf32>
    %c0_9 = arith.constant 0 : index
    %c0_10 = arith.constant 0 : index
    %11 = vector.load %arg5[%c0_9, %c0_10] : memref<8x1xf32, #tpu.memory_space<vmem>>, vector<8x1xf32>
    %12 = vector.broadcast %11 : vector<8x1xf32> to vector<8x8xf32>
    %13 = arith.addf %10, %12 : vector<8x8xf32>
    %cst_11 = arith.constant 0.000000e+00 : f32
    %14 = vector.broadcast %cst_11 : f32 to vector<8x8xf32>
    %15 = arith.maximumf %13, %14 : vector<8x8xf32>
    %c0_12 = arith.constant 0 : index
    %c0_13 = arith.constant 0 : index
    %16 = vector.load %arg6[%c0_12, %c0_13] : memref<1x8xf32, #tpu.memory_space<vmem>>, vector<1x8xf32>
    %cst_14 = arith.constant dense<0.000000e+00> : vector<1x8xf32>
    %17 = tpu.matmul %16, %15, %cst_14 {dimension_numbers = #tpu.dot_dimension_numbers<[1], [0], [0], [1], [0, 0, 1, 1], [], []>} : vector<1x8xf32>, vector<8x8xf32>, vector<1x8xf32> -> vector<1x8xf32>
    %c0_15 = arith.constant 0 : index
    %c0_16 = arith.constant 0 : index
    %18 = vector.load %arg7[%c0_15, %c0_16] : memref<1x1xf32, #tpu.memory_space<vmem>>, vector<1x1xf32>
    %19 = vector.broadcast %18 : vector<1x1xf32> to vector<1x8xf32>
    %20 = arith.addf %17, %19 : vector<1x8xf32>
    %21 = arith.negf %20 : vector<1x8xf32>
    %22 = math.exp %21 : vector<1x8xf32>
    %cst_17 = arith.constant 1.000000e+00 : f32
    %23 = vector.broadcast %cst_17 : f32 to vector<1x8xf32>
    %24 = arith.addf %23, %22 : vector<1x8xf32>
    %25 = arith.divf %23, %24 : vector<1x8xf32>
    %c0_18 = arith.constant 0 : index
    %c0_19 = arith.constant 0 : index
    %26 = vector.load %arg8[%c0_18, %c0_19] : memref<1x8xf32, #tpu.memory_space<vmem>>, vector<1x8xf32>
    tpu.vector_store %arg8[%c0_18, %c0_19], %25 {strides = array<i32>} : memref<1x8xf32, #tpu.memory_space<vmem>>, vector<1x8xf32>,
    return
  }
  func.func @transform_0(%arg0: i32) -> (i32, i32) {
    %c0_i32 = arith.constant 0 : i32
    %c0_i32_0 = arith.constant 0 : i32
    return %arg0, %c0_i32 : i32, i32
  }
  func.func @transform_1(%arg0: i32) -> (i32, i32) {
    %c0_i32 = arith.constant 0 : i32
    %c0_i32_0 = arith.constant 0 : i32
    %c0_i32_1 = arith.constant 0 : i32
    return %c0_i32, %c0_i32_0 : i32, i32
  }
  func.func @transform_2(%arg0: i32) -> (i32, i32) {
    %c0_i32 = arith.constant 0 : i32
    %c0_i32_0 = arith.constant 0 : i32
    %c0_i32_1 = arith.constant 0 : i32
    return %c0_i32, %c0_i32_0 : i32, i32
  }
  func.func @transform_3(%arg0: i32) -> (i32, i32) {
    %c0_i32 = arith.constant 0 : i32
    %c0_i32_0 = arith.constant 0 : i32
    %c0_i32_1 = arith.constant 0 : i32
    return %c0_i32, %c0_i32_0 : i32, i32
  }
  func.func @transform_4(%arg0: i32) -> (i32, i32) {
    %c0_i32 = arith.constant 0 : i32
    %c0_i32_0 = arith.constant 0 : i32
    %c0_i32_1 = arith.constant 0 : i32
    return %c0_i32, %c0_i32_0 : i32, i32
  }
  func.func @transform_5(%arg0: i32) -> (i32, i32) {
    %c0_i32 = arith.constant 0 : i32
    %c0_i32_0 = arith.constant 0 : i32
    %c0_i32_1 = arith.constant 0 : i32
    return %c0_i32, %c0_i32_0 : i32, i32
  }
  func.func @transform_6(%arg0: i32) -> (i32, i32) {
    %c0_i32 = arith.constant 0 : i32
    %c0_i32_0 = arith.constant 0 : i32
    %c0_i32_1 = arith.constant 0 : i32
    return %c0_i32, %c0_i32_0 : i32, i32
  }
  func.func @transform_7(%arg0: i32) -> (i32, i32) {
    %c0_i32 = arith.constant 0 : i32
    %c0_i32_0 = arith.constant 0 : i32
    return %c0_i32, %arg0 : i32, i32
  }
}

</mosaic_0001>

<llo_original>
// kernel: tpu_custom_call.1
$region0: #{tpu_custom_call.1}
  #allocation0 [shape = 'u32[]', space=smem, size = 0x4, offset = 0x4, fixed_abs, tag = 'smem constant byte address 0x4 - core index']
  #allocation1 [shape = 'u32[72,128]{1,0:T(1,128)}', space=vmem, size = 0x9000, scoped, tag = 'internal scratch']
  #allocation2 [shape = 'f32[1,1]{1,0:T(1,128)S(1)}', space=vmem, size = 0x200, scoped, tag = 'scoped memory for tpu_custom_call.1']
  %s0 = inlined_call_operand.vmem [shape: f32[8,32], index: 0, kind: input, shape index: {}]
  %s1 = inlined_call_operand.vmem [shape: f32[16,32], index: 1, kind: input, shape index: {}]
  %s2 = inlined_call_operand.vmem [shape: f32[16,1], index: 2, kind: input, shape index: {}]
  %s3 = inlined_call_operand.hbm [shape: f32[8,16], index: 3, kind: input, shape index: {}]
  %s4 = inlined_call_operand.vmem [shape: f32[8,1], index: 4, kind: input, shape index: {}]
  %s5 = inlined_call_operand.vmem [shape: f32[1,8], index: 5, kind: input, shape index: {}]
  %s6 = inlined_call_operand.<no memory space> [shape: f32[1,1], index: 6, kind: input, shape index: {}]
  %s7 = inlined_call_operand.hbm [shape: f32[1,8], index: 7, kind: output, shape index: {}]
  %s8 = sld [smem:[#allocation0]]
  $region42: #{tpu_custom_call.1} parent=0
    _
  %s10 = ssub.s32 1, %s8
  %s11 = scalar_select 0, %s10, %s8
  %v12 = vstv %s6
  %13 = vst [vmem:[#allocation2] sm:$0x1] %v12
  $region1: #{tpu_custom_call.1} parent=0
    #allocation3 [shape = 'u8[4096]{0}', space=vmem, size = 0x1000, scoped, tag = 'input window, operand 3, single buffered']
    #allocation4 [shape = 's32[1]{0}', space=sflag, size = 0x4, scoped, tag = 'scoped memory for tpu_custom_call.1']
    #allocation5 [shape = 's32[1]{0}', space=sflag, size = 0x4, scoped, tag = 'scoped memory for tpu_custom_call.1']
    #allocation6 [shape = 'u8[512]{0}', space=vmem, size = 0x400, scoped, tag = 'output window, operand 0, single buffered']
    %14 = vsyncpa [#allocation4], 0
    %15 = vsyncpa [#allocation5], 0
    // Predicated region
    $region2: #{tpu_custom_call.1} parent=1 // pred_check
      _
    $region3: #{tpu_custom_call.1} parent=1 // pred_check_branch
      %17 = sbr.rel (0) target = $region5
    $region4: #{tpu_custom_call.1} parent=1 // pred_region
      _
    $region5: #{tpu_custom_call.1} parent=1 // pred_fallthru
      _
    // Predicated region
    $region6: #{tpu_custom_call.1} parent=1 // pred_check
      _
    $region7: #{tpu_custom_call.1} parent=1 // pred_check_branch
      %19 = sbr.rel (0) target = $region9
    $region8: #{tpu_custom_call.1} parent=1 // pred_region
      _
    $region9: #{tpu_custom_call.1} parent=1 // pred_fallthru
      _
    // Predicated region
    $region10: #{tpu_custom_call.1} parent=1 // pred_check
      _
    $region11: #{tpu_custom_call.1} parent=1 // pred_check_branch
      %21 = sbr.rel (0) target = $region13
    $region12: #{tpu_custom_call.1} parent=1 // pred_region
      _
    $region13: #{tpu_custom_call.1} parent=1 // pred_fallthru
      _
    // Predicated region
    $region14: #{tpu_custom_call.1} parent=1 // pred_check
      _
    $region15: #{tpu_custom_call.1} parent=1 // pred_check_branch
      %23 = sbr.rel (0) target = $region17
    $region16: #{tpu_custom_call.1} parent=1 // pred_region
      %25 = vsyncadd [#allocation4], 0
      %s27 = sshll.u32 %s3, 4
      %s28 = int_to_ptr.hbm [resolvable:$true] %s27
      %s29 = sshll.u32 [#allocation3], 4
      %s30 = int_to_ptr.vmem [resolvable:$true] %s29
      %32 = dma.hbm_to_vmem [thread:$0]  %s28, 128, %s30, [#allocation4]
    $region17: #{tpu_custom_call.1} parent=1 // pred_fallthru
      _
    // Predicated region
    $region18: #{tpu_custom_call.1} parent=1 // pred_check
      _
    $region19: #{tpu_custom_call.1} parent=1 // pred_check_branch
      %34 = sbr.rel (0) target = $region21
    $region20: #{tpu_custom_call.1} parent=1 // pred_region
      _
    $region21: #{tpu_custom_call.1} parent=1 // pred_fallthru
      _
    // Predicated region
    $region22: #{tpu_custom_call.1} parent=1 // pred_check
      _
    $region23: #{tpu_custom_call.1} parent=1 // pred_check_branch
      %36 = sbr.rel (0) target = $region25
    $region24: #{tpu_custom_call.1} parent=1 // pred_region
      _
    $region25: #{tpu_custom_call.1} parent=1 // pred_fallthru
      _
    // Predicated region
    $region26: #{tpu_custom_call.1} parent=1 // pred_check
      _
    $region27: #{tpu_custom_call.1} parent=1 // pred_check_branch
      %38 = sbr.rel (0) target = $region29
    $region28: #{tpu_custom_call.1} parent=1 // pred_region
      _
    $region29: #{tpu_custom_call.1} parent=1 // pred_fallthru
      _
    // Predicated region
    $region30: #{tpu_custom_call.1} parent=1 // pred_check
      _
    $region31: #{tpu_custom_call.1} parent=1 // pred_check_branch
      %40 = sbr.rel (0) target = $region33
    $region32: #{tpu_custom_call.1} parent=1 // pred_region
      %42 = dma.done [#allocation4], 128
    $region33: #{tpu_custom_call.1} parent=1 // pred_fallthru
      _
    %v43 = vld [vmem:[%s0] sm:$0xff]
    %v44 = vld [vmem:[%s1] sm:$0xff]
    %v45 = vld [vmem:[%s1 + $0x8] sm:$0xff]
    %v46 = vld [vmem:[%s2] sm:$0xff]
    %v47 = vld [vmem:[%s2 + $0x8] sm:$0xff]
    %49 = vset.pattern.permute.xlu0 0
    %50 = vperm.xlu0 %49, %v46
    %v51 = vpop.permute.xlu0 %50
    %54 = vset.pattern.permute.xlu0 0
    %55 = vperm.xlu0 %54, %v47
    %v56 = vpop.permute.xlu0 %55
    %vm58 = vcmask 261120
    %v60 = vsel %vm58, %v44, 0
    %v63 = vsel %vm58, %v45, 0
    %v66 = vsel %vm58, %v43, 0
    %68 = vmatpush.xpose.msra.mxu0 0.0
    %69 = vmatpush.xpose.msra.mxu0 0.0
    %70 = vmatpush.xpose.msra.mxu0 0.0
    %71 = vmatpush.xpose.msra.mxu0 0.0
    %72 = vmatpush.xpose.msra.mxu0 0.0
    %73 = vmatpush.xpose.msra.mxu0 0.0
    %74 = vmatpush.xpose.msra.mxu0 0.0
    %75 = vmatpush.xpose.msra.mxu0 0.0
    %76 = vmatpush.xpose.msra.mxu0 0.0
    %77 = vmatpush.xpose.msra.mxu0 0.0
    %78 = vmatpush.xpose.msra.mxu0 0.0
    %79 = vmatpush.xpose.msra.mxu0 0.0
    %80 = vmatpush.xpose.msra.mxu0 0.0
    %81 = vmatpush.xpose.msra.mxu0 0.0
    %82 = vmatpush.xpose.msra.mxu0 0.0
    %83 = vmatpush.xpose.msra.mxu0 %v66
    %84 = vmatmul.f32.gmra.mxu0 %v60
    %v85 = vpop.f32.mrf.mxu0
    %v86 = vadd.f32 %v51, %v85
    %87 = vmatmul.f32.gmra.mxu0 %v63
    %v88 = vpop.f32.mrf.mxu0
    %v89 = vadd.f32 %v56, %v88
    %90 = vdwg.mxu0
    %v91 = vmax.f32 %v86, 0.0
    %v92 = vmax.f32 %v89, 0.0
    %v93 = vld [vmem:[#allocation3] sm:$0xff]
    %v94 = vld [vmem:[%s4] sm:$0xff]
    %96 = vset.pattern.permute.xlu0 0
    %97 = vperm.xlu0 %96, %v94
    %v98 = vpop.permute.xlu0 %97
    %vm100 = vcmask 130048
    %v102 = vsel %vm100, %v93, 0
    %104 = vmatpush.msra.mxu0 0.0
    %105 = vmatpush.msra.mxu0 0.0
    %106 = vmatpush.msra.mxu0 0.0
    %107 = vmatpush.msra.mxu0 0.0
    %108 = vmatpush.msra.mxu0 0.0
    %109 = vmatpush.msra.mxu0 0.0
    %110 = vmatpush.msra.mxu0 0.0
    %111 = vmatpush.msra.mxu0 0.0
    %112 = vmatpush.msra.mxu0 0.0
    %113 = vmatpush.msra.mxu0 0.0
    %114 = vmatpush.msra.mxu0 0.0
    %115 = vmatpush.msra.mxu0 0.0
    %116 = vmatpush.msra.mxu0 0.0
    %117 = vmatpush.msra.mxu0 0.0
    %118 = vmatpush.msra.mxu0 %v92
    %119 = vmatpush.msra.mxu0 %v91
    %120 = vmatmul.f32.gmra.mxu0 %v102
    %v121 = vpop.f32.mrf.mxu0
    %v122 = vadd.f32 %v98, %v121
    %123 = vdwg.mxu0
    %v124 = vmax.f32 %v122, 0.0
    %v125 = vld [vmem:[%s5] sm:$0x1]
    %v126 = vld [vmem:[#allocation2] sm:$0x1]
    %128 = vset.pattern.permute.xlu0 0
    %129 = vperm.xlu0 %128, %v126
    %v130 = vpop.permute.xlu0 %129
    %v132 = vperm.slane %v130, 0
    %vm133 = vcmask 64512
    %v135 = vsel %vm133, %v125, 0
    %137 = vmatpush.msra.mxu0 0.0
    %138 = vmatpush.msra.mxu0 0.0
    %139 = vmatpush.msra.mxu0 0.0
    %140 = vmatpush.msra.mxu0 0.0
    %141 = vmatpush.msra.mxu0 0.0
    %142 = vmatpush.msra.mxu0 0.0
    %143 = vmatpush.msra.mxu0 0.0
    %144 = vmatpush.msra.mxu0 0.0
    %145 = vmatpush.msra.mxu0 0.0
    %146 = vmatpush.msra.mxu0 0.0
    %147 = vmatpush.msra.mxu0 0.0
    %148 = vmatpush.msra.mxu0 0.0
    %149 = vmatpush.msra.mxu0 0.0
    %150 = vmatpush.msra.mxu0 0.0
    %151 = vmatpush.msra.mxu0 0.0
    %152 = vmatpush.msra.mxu0 %v124
    %153 = vmatmul.f32.gmra.mxu0 %v135
    %v154 = vpop.f32.mrf.mxu0
    %v155 = vadd.f32 %v132, %v154
    %156 = vdwg.mxu0
    %v157 = vxor.u32 %v155, 2147483648
    %v158 = vmul.f32 %v157, 1.442695
    %v159 = vpow.pop %v158
    %v160 = vadd.f32 %v159, 1.0
    %v161 = vrcp.pop %v160
    %v162 = vmul.f32 %v160, %v161
    %v163 = vsub.f32 1.0, %v162
    %v164 = vmul.f32 %v161, %v163
    %v165 = vadd.f32 %v161, %v164
    %vm166 = vweird.f32 %v160
    %vm167 = vweird.f32 %v161
    %vm168 = vmor %vm166, %vm167
    %v169 = vsel %vm168, %v161, %v165
    %v170 = vand.u32 2147483647, %v160
    %vm171 = vcmp.eq.f32.partialorder %v170, 8.507059e+37
    %v172 = vand.u32 %v160, 2147483648
    %v173 = vor.u32 1.1754944e-38, %v172
    %v174 = vsel %vm171, %v173, %v169
    %v175 = vmul.f32 1.0, %v174
    %vm176 = vcmask 57344
    %177 = vst.msk [vmem:[#allocation6] sm:$0x1] %vm176, %v175
    // Predicated region
    $region34: #{tpu_custom_call.1} parent=1 // pred_check
      _
    $region35: #{tpu_custom_call.1} parent=1 // pred_check_branch
      %179 = sbr.rel (0) target = $region37
    $region36: #{tpu_custom_call.1} parent=1 // pred_region
      %181 = vsyncadd [#allocation5], 0
      %s183 = sshll.u32 [#allocation6], 4
      %s184 = int_to_ptr.vmem [resolvable:$true] %s183
      %s185 = sshll.u32 %s7, 4
      %s186 = int_to_ptr.hbm [resolvable:$true] %s185
      %188 = dma.vmem_to_hbm [thread:$0]  %s184, 16, %s186, [#allocation5]
    $region37: #{tpu_custom_call.1} parent=1 // pred_fallthru
      _
    // Predicated region
    $region38: #{tpu_custom_call.1} parent=1 // pred_check
      _
    $region39: #{tpu_custom_call.1} parent=1 // pred_check_branch
      %190 = sbr.rel (0) target = $region41
    $region40: #{tpu_custom_call.1} parent=1 // pred_region
      %192 = dma.done [#allocation5], 16
    $region41: #{tpu_custom_call.1} parent=1 // pred_fallthru
      _
    %193 = vsyncpa [#allocation4], 1
    %194 = vsyncpa [#allocation5], 1

</llo_original>
